<compile_context>
chip_gen: v6e
topology: v6e:2x2x1
jax: 0.10.0
libtpu: 0.0.40
codegen_flags: <defaults>
</compile_context>

<pallas_src>
import functools

import jax
import jax.numpy as jnp
from jax.experimental import pallas as pl
from jax.experimental.pallas import tpu as pltpu

Z_DIM = 100    # logical latent dim (matches the PyTorch module)
HIDDEN = 128
N_OUT = 784    # 28*28
Z_PAD = 128    # contraction dim padded to a full lane vreg


def _round_up(x, m):
    return (x + m - 1) // m * m


def _pick_tm(batch):
    """Batch tile: multiple of 16, >=2 grid steps for small/medium B (v7x dual TC),
    capped at 512 for large B (amortize per-step pipeline overhead)."""
    if batch <= 16:
        return 16
    if batch <= 1024:
        return min(512, _round_up(-(-batch // 2), 16))
    return 512


def _bf16_eup():
    """bf16 tanh/VPU path only on v6/v7; v5e and older lack bf16 EUP/VPU."""
    try:
        kind = jax.devices()[0].device_kind.lower()
    except Exception:
        return False
    return ("v6" in kind) or ("v7" in kind)


def generator_kernel(x_ref, w1_ref, b1_ref, w2_ref, b2_ref, o_ref, *, bf16_tanh):
    # fc1: (TM, 128)bf16 @ (128, 128)bf16 -> f32 accumulate
    h = jnp.dot(x_ref[...], w1_ref[...], preferred_element_type=jnp.float32)
    h = h + b1_ref[...]
    # LeakyReLU(0.2) in f32
    h = jnp.maximum(h, 0.2 * h)
    # fc2: cast activations to bf16 for a native MXU pass, accumulate in f32
    out = jnp.dot(h.astype(jnp.bfloat16), w2_ref[...],
                  preferred_element_type=jnp.float32)
    out = out + b2_ref[...]          # bias add in f32 (accumulator already f32)
    if bf16_tanh:
        # v6e/v7x: bf16 EUP tanh, halves EUP work; store bf16 directly
        o_ref[...] = jnp.tanh(out.astype(jnp.bfloat16))
    else:
        # v5e: no bf16 EUP — tanh in f32, cast on store
        o_ref[...] = jnp.tanh(out).astype(o_ref.dtype)


def generator_forward(x, params):
    """x: (B, Z_DIM) float32 -> (B, 1, 28, 28) bfloat16 (tanh output in [-1, 1])."""
    w1, b1, w2, b2 = params  # already padded / bf16 (see prepare_params)
    B = x.shape[0]
    TM = _pick_tm(B)
    B_pad = _round_up(B, TM)

    # Pad batch to a multiple of TM and z to 128 lanes; activations in bf16.
    x_p = jnp.zeros((B_pad, Z_PAD), jnp.bfloat16)
    x_p = x_p.at[:B, :Z_DIM].set(x.astype(jnp.bfloat16))

    cost = pl.CostEstimate(
        flops=2 * B_pad * (Z_PAD * HIDDEN + HIDDEN * N_OUT),
        transcendentals=B_pad * N_OUT,
        bytes_accessed=(x_p.size * 2 + w1.size * 2 + w2.size * 2
                        + b1.size * 4 + b2.size * 4 + B_pad * N_OUT * 2),
    )

    kernel = functools.partial(generator_kernel, bf16_tanh=_bf16_eup())

    out_pad = pl.pallas_call(
        kernel,
        out_shape=jax.ShapeDtypeStruct((B_pad, N_OUT), jnp.bfloat16),
        grid=(B_pad // TM,),
        in_specs=[
            pl.BlockSpec((TM, Z_PAD), lambda i: (i, 0)),        # x tile, pipelined
            pl.BlockSpec((Z_PAD, HIDDEN), lambda i: (0, 0)),    # w1 resident in VMEM
            pl.BlockSpec((1, HIDDEN), lambda i: (0, 0)),        # b1 resident
            pl.BlockSpec((HIDDEN, N_OUT), lambda i: (0, 0)),    # w2 resident
            pl.BlockSpec((1, N_OUT), lambda i: (0, 0)),         # b2 resident
        ],
        # full-extent last dim (784) -> no padded-lane writeback, no wrapper depad pass
        out_specs=pl.BlockSpec((TM, N_OUT), lambda i: (i, 0)),
        compiler_params=pltpu.CompilerParams(
            dimension_semantics=("parallel",),   # v7x: shard batch tiles over both TCs
        ),
        cost_estimate=cost,
    )(x_p, w1, b1, w2, b2)

    # Only a (cheap) batch depad remains when B isn't a multiple of TM; the feature
    # dim is already unpadded. Reshape mirrors torch's out.view(B, 1, 28, 28).
    out = out_pad if B_pad == B else out_pad[:B]
    return out.reshape(B, 1, 28, 28)


def init_params(key, z_dim=Z_DIM):
    """f32 logical params mimicking nn.Linear default init U(-1/sqrt(fan_in), +1/sqrt(fan_in)).

    Stored as (in_features, out_features) so the kernel computes x @ W + b.
    """
    k1, k2, k3, k4 = jax.random.split(key, 4)
    bound1 = 1.0 / jnp.sqrt(float(z_dim))
    bound2 = 1.0 / jnp.sqrt(float(HIDDEN))
    w1 = jax.random.uniform(k1, (z_dim, HIDDEN), jnp.float32, -bound1, bound1)
    b1 = jax.random.uniform(k2, (1, HIDDEN), jnp.float32, -bound1, bound1)
    w2 = jax.random.uniform(k3, (HIDDEN, N_OUT), jnp.float32, -bound2, bound2)
    b2 = jax.random.uniform(k4, (1, N_OUT), jnp.float32, -bound2, bound2)
    return w1, b1, w2, b2


def prepare_params(w1, b1, w2, b2):
    """Zero-pad the contraction dim to 128 and cast weights to bf16 (biases stay f32)."""
    w1_p = jnp.zeros((Z_PAD, HIDDEN), jnp.bfloat16).at[:Z_DIM, :].set(
        w1.astype(jnp.bfloat16))
    w2_p = w2.astype(jnp.bfloat16)            # (128, 784), unpadded output dim
    b1_p = b1.astype(jnp.float32)
    b2_p = b2.astype(jnp.float32)
    return w1_p, b1_p, w2_p, b2_p


if __name__ == "__main__":
    batch = 2

    key = jax.random.PRNGKey(0)
    k_params, k_x = jax.random.split(key)
    w1, b1, w2, b2 = init_params(k_params)
    params = prepare_params(w1, b1, w2, b2)
    x = jax.random.normal(k_x, (batch, Z_DIM), jnp.float32)

    out = generator_forward(x, params)
    out = jax.block_until_ready(out)

    # Reference in plain JAX (f32 math on the same bf16-rounded inputs/weights).
    xq = x.astype(jnp.bfloat16).astype(jnp.float32)
    w1q = w1.astype(jnp.bfloat16).astype(jnp.float32)
    w2q = w2.astype(jnp.bfloat16).astype(jnp.float32)
    h_ref = xq @ w1q + b1
    h_ref = jnp.where(h_ref > 0, h_ref, 0.2 * h_ref)
    ref = jnp.tanh(h_ref @ w2q + b2).reshape(batch, 1, 28, 28)

    assert out.shape == (batch, 1, 28, 28)
    out_f32 = out.astype(jnp.float32)
    # bf16 output store (+ bf16 tanh on v6/v7) adds ~4e-3 abs error on the [-1,1] range.
    assert jnp.allclose(out_f32, ref, atol=2.5e-2, rtol=2.5e-2), float(
        jnp.max(jnp.abs(out_f32 - ref)))

    print("KERNEL_OK")
</pallas_src>

<mosaic_0001>
module attributes {stable_mosaic.version = 11 : i64} {
  func.func @generator_kernel(%arg0: i32, %arg1: memref<16x128xbf16, #tpu.memory_space<vmem>>, %arg2: memref<128x128xbf16, #tpu.memory_space<vmem>>, %arg3: memref<1x128xf32, #tpu.memory_space<vmem>>, %arg4: memref<128x784xbf16, #tpu.memory_space<vmem>>, %arg5: memref<1x784xf32, #tpu.memory_space<vmem>>, %arg6: memref<16x784xbf16, #tpu.memory_space<vmem>>) attributes {dimension_semantics = [#tpu.dimension_semantics<parallel>], iteration_bounds = array<i64: 1>, scalar_prefetch = 0 : i64, scratch_operands = 0 : i64, tpu.core_type = #tpu.core_type<tc>, window_params = [{transform_indices = @transform_0, window_bounds = array<i64: 16, 128>}, {pipeline_mode = #tpu.pipeline_mode<synchronous>, transform_indices = @transform_1, window_bounds = array<i64: 128, 128>}, {pipeline_mode = #tpu.pipeline_mode<synchronous>, transform_indices = @transform_2, window_bounds = array<i64: 1, 128>}, {pipeline_mode = #tpu.pipeline_mode<synchronous>, transform_indices = @transform_3, window_bounds = array<i64: 128, 784>}, {pipeline_mode = #tpu.pipeline_mode<synchronous>, transform_indices = @transform_4, window_bounds = array<i64: 1, 784>}, {transform_indices = @transform_5, window_bounds = array<i64: 16, 784>}]} {
    %c0 = arith.constant 0 : index
    %c0_0 = arith.constant 0 : index
    %0 = vector.load %arg1[%c0, %c0_0] : memref<16x128xbf16, #tpu.memory_space<vmem>>, vector<16x128xbf16>
    %c0_1 = arith.constant 0 : index
    %c0_2 = arith.constant 0 : index
    %1 = vector.load %arg2[%c0_1, %c0_2] : memref<128x128xbf16, #tpu.memory_space<vmem>>, vector<128x128xbf16>
    %cst = arith.constant dense<0.000000e+00> : vector<16x128xf32>
    %2 = tpu.matmul %0, %1, %cst {dimension_numbers = #tpu.dot_dimension_numbers<[1], [0], [0], [1], [0, 0, 1, 1], [], []>} : vector<16x128xbf16>, vector<128x128xbf16>, vector<16x128xf32> -> vector<16x128xf32>
    %c0_3 = arith.constant 0 : index
    %c0_4 = arith.constant 0 : index
    %3 = vector.load %arg3[%c0_3, %c0_4] : memref<1x128xf32, #tpu.memory_space<vmem>>, vector<1x128xf32>
    %4 = vector.broadcast %3 : vector<1x128xf32> to vector<16x128xf32>
    %5 = arith.addf %2, %4 : vector<16x128xf32>
    %cst_5 = arith.constant 2.000000e-01 : f32
    %6 = vector.broadcast %cst_5 : f32 to vector<16x128xf32>
    %7 = arith.mulf %6, %5 : vector<16x128xf32>
    %8 = arith.maximumf %5, %7 : vector<16x128xf32>
    %9 = arith.truncf %8 : vector<16x128xf32> to vector<16x128xbf16>
    %c0_6 = arith.constant 0 : index
    %c0_7 = arith.constant 0 : index
    %10 = vector.load %arg4[%c0_6, %c0_7] : memref<128x784xbf16, #tpu.memory_space<vmem>>, vector<128x784xbf16>
    %cst_8 = arith.constant dense<0.000000e+00> : vector<16x784xf32>
    %11 = tpu.matmul %9, %10, %cst_8 {dimension_numbers = #tpu.dot_dimension_numbers<[1], [0], [0], [1], [0, 0, 1, 1], [], []>} : vector<16x128xbf16>, vector<128x784xbf16>, vector<16x784xf32> -> vector<16x784xf32>
    %c0_9 = arith.constant 0 : index
    %c0_10 = arith.constant 0 : index
    %12 = vector.load %arg5[%c0_9, %c0_10] : memref<1x784xf32, #tpu.memory_space<vmem>>, vector<1x784xf32>
    %13 = vector.broadcast %12 : vector<1x784xf32> to vector<16x784xf32>
    %14 = arith.addf %11, %13 : vector<16x784xf32>
    %15 = math.tanh %14 : vector<16x784xf32>
    %16 = arith.truncf %15 : vector<16x784xf32> to vector<16x784xbf16>
    %c0_11 = arith.constant 0 : index
    %c0_12 = arith.constant 0 : index
    %17 = vector.load %arg6[%c0_11, %c0_12] : memref<16x784xbf16, #tpu.memory_space<vmem>>, vector<16x784xbf16>
    tpu.vector_store %arg6[%c0_11, %c0_12], %16 {strides = array<i32>} : memref<16x784xbf16, #tpu.memory_space<vmem>>, vector<16x784xbf16>,
    return
  }
  func.func @transform_0(%arg0: i32) -> (i32, i32) {
    %c0_i32 = arith.constant 0 : i32
    %c0_i32_0 = arith.constant 0 : i32
    return %arg0, %c0_i32 : i32, i32
  }
  func.func @transform_1(%arg0: i32) -> (i32, i32) {
    %c0_i32 = arith.constant 0 : i32
    %c0_i32_0 = arith.constant 0 : i32
    %c0_i32_1 = arith.constant 0 : i32
    return %c0_i32, %c0_i32_0 : i32, i32
  }
  func.func @transform_2(%arg0: i32) -> (i32, i32) {
    %c0_i32 = arith.constant 0 : i32
    %c0_i32_0 = arith.constant 0 : i32
    %c0_i32_1 = arith.constant 0 : i32
    return %c0_i32, %c0_i32_0 : i32, i32
  }
  func.func @transform_3(%arg0: i32) -> (i32, i32) {
    %c0_i32 = arith.constant 0 : i32
    %c0_i32_0 = arith.constant 0 : i32
    %c0_i32_1 = arith.constant 0 : i32
    return %c0_i32, %c0_i32_0 : i32, i32
  }
  func.func @transform_4(%arg0: i32) -> (i32, i32) {
    %c0_i32 = arith.constant 0 : i32
    %c0_i32_0 = arith.constant 0 : i32
    %c0_i32_1 = arith.constant 0 : i32
    return %c0_i32, %c0_i32_0 : i32, i32
  }
  func.func @transform_5(%arg0: i32) -> (i32, i32) {
    %c0_i32 = arith.constant 0 : i32
    %c0_i32_0 = arith.constant 0 : i32
    return %arg0, %c0_i32 : i32, i32
  }
}

</mosaic_0001>

<llo_original>
// kernel: tpu_custom_call.1
$region0: #{tpu_custom_call.1}
  #allocation0 [shape = 'u32[]', space=smem, size = 0x4, offset = 0x4, fixed_abs, tag = 'smem constant byte address 0x4 - core index']
  #allocation1 [shape = 'u32[144,128]{1,0:T(1,128)}', space=vmem, size = 0x12000, scoped, tag = 'internal scratch']
  %s0 = inlined_call_operand.vmem [shape: bf16[16,128], index: 0, kind: input, shape index: {}]
  %s1 = inlined_call_operand.vmem [shape: bf16[128,128], index: 1, kind: input, shape index: {}]
  %s2 = inlined_call_operand.vmem [shape: f32[1,128], index: 2, kind: input, shape index: {}]
  %s3 = inlined_call_operand.vmem [shape: bf16[128,784], index: 3, kind: input, shape index: {}]
  %s4 = inlined_call_operand.vmem [shape: f32[1,784], index: 4, kind: input, shape index: {}]
  %s5 = inlined_call_operand.hbm [shape: bf16[16,784], index: 5, kind: output, shape index: {}]
  %s6 = sld [smem:[#allocation0]]
  $region30: #{tpu_custom_call.1} parent=0
    _
  %s8 = ssub.s32 1, %s6
  %s9 = scalar_select 0, %s8, %s6
  $region1: #{tpu_custom_call.1} parent=0
    #allocation2 [shape = 'u8[28672]{0}', space=vmem, size = 0x7000, scoped, tag = 'output window, operand 0, single buffered']
    #allocation3 [shape = 's32[1]{0}', space=sflag, size = 0x4, scoped, tag = 'scoped memory for tpu_custom_call.1']
    %10 = vsyncpa [#allocation3], 0
    // Predicated region
    $region2: #{tpu_custom_call.1} parent=1 // pred_check
      _
    $region3: #{tpu_custom_call.1} parent=1 // pred_check_branch
      %12 = sbr.rel (0) target = $region5
    $region4: #{tpu_custom_call.1} parent=1 // pred_region
      _
    $region5: #{tpu_custom_call.1} parent=1 // pred_fallthru
      _
    // Predicated region
    $region6: #{tpu_custom_call.1} parent=1 // pred_check
      _
    $region7: #{tpu_custom_call.1} parent=1 // pred_check_branch
      %14 = sbr.rel (0) target = $region9
    $region8: #{tpu_custom_call.1} parent=1 // pred_region
      _
    $region9: #{tpu_custom_call.1} parent=1 // pred_fallthru
      _
    // Predicated region
    $region10: #{tpu_custom_call.1} parent=1 // pred_check
      _
    $region11: #{tpu_custom_call.1} parent=1 // pred_check_branch
      %16 = sbr.rel (0) target = $region13
    $region12: #{tpu_custom_call.1} parent=1 // pred_region
      _
    $region13: #{tpu_custom_call.1} parent=1 // pred_fallthru
      _
    // Predicated region
    $region14: #{tpu_custom_call.1} parent=1 // pred_check
      _
    $region15: #{tpu_custom_call.1} parent=1 // pred_check_branch
      %18 = sbr.rel (0) target = $region17
    $region16: #{tpu_custom_call.1} parent=1 // pred_region
      _
    $region17: #{tpu_custom_call.1} parent=1 // pred_fallthru
      _
    // Predicated region
    $region18: #{tpu_custom_call.1} parent=1 // pred_check
      _
    $region19: #{tpu_custom_call.1} parent=1 // pred_check_branch
      %20 = sbr.rel (0) target = $region21
    $region20: #{tpu_custom_call.1} parent=1 // pred_region
      _
    $region21: #{tpu_custom_call.1} parent=1 // pred_fallthru
      _
    %v22 = vld [vmem:[%s0] sm:$0xf]
    %v23 = vld [vmem:[%s0 + $0x4] sm:$0xf]
    %v24 = vld [vmem:[%s1] sm:$0xf]
    %v25 = vld [vmem:[%s1 + $0x4] sm:$0xf]
    %v26 = vld [vmem:[%s1 + $0x8] sm:$0xf]
    %v27 = vld [vmem:[%s1 + $0xc] sm:$0xf]
    %v28 = vld [vmem:[%s1 + $0x10] sm:$0xf]
    %v29 = vld [vmem:[%s1 + $0x14] sm:$0xf]
    %v30 = vld [vmem:[%s1 + $0x18] sm:$0xf]
    %v31 = vld [vmem:[%s1 + $0x1c] sm:$0xf]
    %v32 = vld [vmem:[%s1 + $0x20] sm:$0xf]
    %v33 = vld [vmem:[%s1 + $0x24] sm:$0xf]
    %v34 = vld [vmem:[%s1 + $0x28] sm:$0xf]
    %v35 = vld [vmem:[%s1 + $0x2c] sm:$0xf]
    %v36 = vld [vmem:[%s1 + $0x30] sm:$0xf]
    %v37 = vld [vmem:[%s1 + $0x34] sm:$0xf]
    %v38 = vld [vmem:[%s1 + $0x38] sm:$0xf]
    %v39 = vld [vmem:[%s1 + $0x3c] sm:$0xf]
    %v40 = vld [vmem:[%s2] sm:$0x1]
    %v42 = vlaneseq
    %v43 = vshrl.u32 %v42, 7
    %v44 = vsub.s32 0, %v43
    %v45 = vrot.slane %v40, %v44
    %v49 = vunpack.c.l.b16 %v22
    %v50 = vunpack.c.l.b16 %v23
    %v51 = vpack.c.b16 %v50, %v49
    %v69 = vunpack.c.l.b16 %v24
    %v70 = vunpack.c.l.b16 %v25
    %v71 = vunpack.c.l.b16 %v26
    %v72 = vunpack.c.l.b16 %v27
    %v73 = vunpack.c.l.b16 %v28
    %v74 = vunpack.c.l.b16 %v29
    %v75 = vunpack.c.l.b16 %v30
    %v76 = vunpack.c.l.b16 %v31
    %v77 = vunpack.c.l.b16 %v32
    %v78 = vunpack.c.l.b16 %v33
    %v79 = vunpack.c.l.b16 %v34
    %v80 = vunpack.c.l.b16 %v35
    %v81 = vunpack.c.l.b16 %v36
    %v82 = vunpack.c.l.b16 %v37
    %v83 = vunpack.c.l.b16 %v38
    %v84 = vunpack.c.l.b16 %v39
    %v85 = vpack.c.b16 %v70, %v69
    %v86 = vpack.c.b16 %v72, %v71
    %v87 = vpack.c.b16 %v74, %v73
    %v88 = vpack.c.b16 %v76, %v75
    %v89 = vpack.c.b16 %v78, %v77
    %v90 = vpack.c.b16 %v80, %v79
    %v91 = vpack.c.b16 %v82, %v81
    %v92 = vpack.c.b16 %v84, %v83
    %101 = vmatprep.subr.bf16.mxu0 0
    %102 = vmatpush1.bf16.msra.mxu0 %v92
    %103 = vmatprep.subr.bf16.mxu0 0
    %104 = vmatpush1.bf16.msra.mxu0 %v91
    %105 = vmatprep.subr.bf16.mxu0 0
    %106 = vmatpush1.bf16.msra.mxu0 %v90
    %107 = vmatprep.subr.bf16.mxu0 0
    %108 = vmatpush1.bf16.msra.mxu0 %v89
    %109 = vmatprep.subr.bf16.mxu0 0
    %110 = vmatpush1.bf16.msra.mxu0 %v88
    %111 = vmatprep.subr.bf16.mxu0 0
    %112 = vmatpush1.bf16.msra.mxu0 %v87
    %113 = vmatprep.subr.bf16.mxu0 0
    %114 = vmatpush1.bf16.msra.mxu0 %v86
    %115 = vmatprep.subr.bf16.mxu0 0
    %116 = vmatpush1.bf16.msra.mxu0 %v85
    %117 = vmatprep.subr.bf16.mxu0 0
    %118 = vmatpush2.bf16.msra.mxu0 0
    %119 = vmatprep.subr.bf16.mxu0 0
    %120 = vmatpush2.bf16.msra.mxu0 0
    %121 = vmatprep.subr.bf16.mxu0 0
    %122 = vmatpush2.bf16.msra.mxu0 0
    %123 = vmatprep.subr.bf16.mxu0 0
    %124 = vmatpush2.bf16.msra.mxu0 0
    %125 = vmatprep.subr.bf16.mxu0 0
    %126 = vmatpush2.bf16.msra.mxu0 0
    %127 = vmatprep.subr.bf16.mxu0 0
    %128 = vmatpush2.bf16.msra.mxu0 0
    %129 = vmatprep.subr.bf16.mxu0 0
    %130 = vmatpush2.bf16.msra.mxu0 0
    %131 = vmatprep.subr.bf16.mxu0 0
    %132 = vmatpush2.bf16.msra.mxu0 0
    %133 = vmatprep.mubr.bf16.mxu0 0
    %134 = vmatmul.mubr.bf16.gmra.mxu0 %v51
    %v135 = vpop.f32.mrf.mxu0
    %v136 = vadd.f32 %v45, %v135
    %v137 = vpop.f32.mrf.mxu0
    %v138 = vpop.f32.mrf.mxu0
    %v139 = vadd.f32 %v45, %v138
    %v140 = vpop.f32.mrf.mxu0
    %141 = vdwg.mxu0
    %v142 = vmul.f32 %v136, 0.2
    %v143 = vmul.f32 %v139, 0.2
    %v144 = vmax.f32 %v136, %v142
    %v145 = vmax.f32 %v139, %v143
    %v146 = vpack.c.bf16 %v145, %v144
    %v147 = vld [vmem:[%s3] sm:$0xff]
    %v148 = vld [vmem:[%s3 + $0x8] sm:$0xff]
    %v149 = vld [vmem:[%s3 + $0x10] sm:$0xff]
    %v150 = vld [vmem:[%s3 + $0x18] sm:$0xf]
    %v151 = vld [vmem:[%s3 + $0x1c] sm:$0xff]
    %v152 = vld [vmem:[%s3 + $0x24] sm:$0xff]
    %v153 = vld [vmem:[%s3 + $0x2c] sm:$0xff]
    %v154 = vld [vmem:[%s3 + $0x34] sm:$0xf]
    %v155 = vld [vmem:[%s3 + $0x38] sm:$0xff]
    %v156 = vld [vmem:[%s3 + $0x40] sm:$0xff]
    %v157 = vld [vmem:[%s3 + $0x48] sm:$0xff]
    %v158 = vld [vmem:[%s3 + $0x50] sm:$0xf]
    %v159 = vld [vmem:[%s3 + $0x54] sm:$0xff]
    %v160 = vld [vmem:[%s3 + $0x5c] sm:$0xff]
    %v161 = vld [vmem:[%s3 + $0x64] sm:$0xff]
    %v162 = vld [vmem:[%s3 + $0x6c] sm:$0xf]
    %v163 = vld [vmem:[%s3 + $0x70] sm:$0xff]
    %v164 = vld [vmem:[%s3 + $0x78] sm:$0xff]
    %v165 = vld [vmem:[%s3 + $0x80] sm:$0xff]
    %v166 = vld [vmem:[%s3 + $0x88] sm:$0xf]
    %v167 = vld [vmem:[%s3 + $0x8c] sm:$0xff]
    %v168 = vld [vmem:[%s3 + $0x94] sm:$0xff]
    %v169 = vld [vmem:[%s3 + $0x9c] sm:$0xff]
    %v170 = vld [vmem:[%s3 + $0xa4] sm:$0xf]
    %v171 = vld [vmem:[%s3 + $0xa8] sm:$0xff]
    %v172 = vld [vmem:[%s3 + $0xb0] sm:$0xff]
    %v173 = vld [vmem:[%s3 + $0xb8] sm:$0xff]
    %v174 = vld [vmem:[%s3 + $0xc0] sm:$0xf]
    %v175 = vld [vmem:[%s3 + $0xc4] sm:$0xff]
    %v176 = vld [vmem:[%s3 + $0xcc] sm:$0xff]
    %v177 = vld [vmem:[%s3 + $0xd4] sm:$0xff]
    %v178 = vld [vmem:[%s3 + $0xdc] sm:$0xf]
    %v179 = vld [vmem:[%s3 + $0xe0] sm:$0xff]
    %v180 = vld [vmem:[%s3 + $0xe8] sm:$0xff]
    %v181 = vld [vmem:[%s3 + $0xf0] sm:$0xff]
    %v182 = vld [vmem:[%s3 + $0xf8] sm:$0xf]
    %v183 = vld [vmem:[%s3 + $0xfc] sm:$0xff]
    %v184 = vld [vmem:[%s3 + $0x104] sm:$0xff]
    %v185 = vld [vmem:[%s3 + $0x10c] sm:$0xff]
    %v186 = vld [vmem:[%s3 + $0x114] sm:$0xf]
    %v187 = vld [vmem:[%s3 + $0x118] sm:$0xff]
    %v188 = vld [vmem:[%s3 + $0x120] sm:$0xff]
    %v189 = vld [vmem:[%s3 + $0x128] sm:$0xff]
    %v190 = vld [vmem:[%s3 + $0x130] sm:$0xf]
    %v191 = vld [vmem:[%s3 + $0x134] sm:$0xff]
    %v192 = vld [vmem:[%s3 + $0x13c] sm:$0xff]
    %v193 = vld [vmem:[%s3 + $0x144] sm:$0xff]
    %v194 = vld [vmem:[%s3 + $0x14c] sm:$0xf]
    %v195 = vld [vmem:[%s3 + $0x150] sm:$0xff]
    %v196 = vld [vmem:[%s3 + $0x158] sm:$0xff]
    %v197 = vld [vmem:[%s3 + $0x160] sm:$0xff]
    %v198 = vld [vmem:[%s3 + $0x168] sm:$0xf]
    %v199 = vld [vmem:[%s3 + $0x16c] sm:$0xff]
    %v200 = vld [vmem:[%s3 + $0x174] sm:$0xff]
    %v201 = vld [vmem:[%s3 + $0x17c] sm:$0xff]
    %v202 = vld [vmem:[%s3 + $0x184] sm:$0xf]
    %v203 = vld [vmem:[%s3 + $0x188] sm:$0xff]
    %v204 = vld [vmem:[%s3 + $0x190] sm:$0xff]
    %v205 = vld [vmem:[%s3 + $0x198] sm:$0xff]
    %v206 = vld [vmem:[%s3 + $0x1a0] sm:$0xf]
    %v207 = vld [vmem:[%s3 + $0x1a4] sm:$0xff]
    %v208 = vld [vmem:[%s3 + $0x1ac] sm:$0xff]
    %v209 = vld [vmem:[%s3 + $0x1b4] sm:$0xff]
    %v210 = vld [vmem:[%s3 + $0x1bc] sm:$0xf]
    %v211 = vld [vmem:[%s4] sm:$0x7f]
    %v213 = vlaneseq
    %v214 = vshrl.u32 %v213, 7
    %v215 = vsub.s32 0, %v214
    %v216 = vrot.slane %v211, %v215
    %v217 = vlaneseq
    %v218 = vshrl.u32 %v217, 7
    %v219 = vsub.s32 1, %v218
    %v220 = vrot.slane %v211, %v219
    %v221 = vlaneseq
    %v222 = vshrl.u32 %v221, 7
    %v223 = vsub.s32 2, %v222
    %v224 = vrot.slane %v211, %v223
    %v225 = vlaneseq
    %v226 = vshrl.u32 %v225, 7
    %v227 = vsub.s32 3, %v226
    %v228 = vrot.slane %v211, %v227
    %v229 = vlaneseq
    %v230 = vshrl.u32 %v229, 7
    %v231 = vsub.s32 4, %v230
    %v232 = vrot.slane %v211, %v231
    %v233 = vlaneseq
    %v234 = vshrl.u32 %v233, 7
    %v235 = vsub.s32 5, %v234
    %v236 = vrot.slane %v211, %v235
    %v237 = vlaneseq
    %v238 = vshrl.u32 %v237, 7
    %v239 = vsub.s32 6, %v238
    %v240 = vrot.slane %v211, %v239
    %v312 = vunpack.c.l.b16 %v147
    %v313 = vunpack.c.h.b16 %v147
    %v314 = vunpack.c.l.b16 %v148
    %v315 = vunpack.c.h.b16 %v148
    %v316 = vunpack.c.l.b16 %v149
    %v317 = vunpack.c.h.b16 %v149
    %v318 = vunpack.c.l.b16 %v150
    %v319 = vunpack.c.l.b16 %v151
    %v320 = vunpack.c.h.b16 %v151
    %v321 = vunpack.c.l.b16 %v152
    %v322 = vunpack.c.h.b16 %v152
    %v323 = vunpack.c.l.b16 %v153
    %v324 = vunpack.c.h.b16 %v153
    %v325 = vunpack.c.l.b16 %v154
    %v326 = vunpack.c.l.b16 %v155
    %v327 = vunpack.c.h.b16 %v155
    %v328 = vunpack.c.l.b16 %v156
    %v329 = vunpack.c.h.b16 %v156
    %v330 = vunpack.c.l.b16 %v157
    %v331 = vunpack.c.h.b16 %v157
    %v332 = vunpack.c.l.b16 %v158
    %v333 = vunpack.c.l.b16 %v159
    %v334 = vunpack.c.h.b16 %v159
    %v335 = vunpack.c.l.b16 %v160
    %v336 = vunpack.c.h.b16 %v160
    %v337 = vunpack.c.l.b16 %v161
    %v338 = vunpack.c.h.b16 %v161
    %v339 = vunpack.c.l.b16 %v162
    %v340 = vunpack.c.l.b16 %v163
    %v341 = vunpack.c.h.b16 %v163
    %v342 = vunpack.c.l.b16 %v164
    %v343 = vunpack.c.h.b16 %v164
    %v344 = vunpack.c.l.b16 %v165
    %v345 = vunpack.c.h.b16 %v165
    %v346 = vunpack.c.l.b16 %v166
    %v347 = vunpack.c.l.b16 %v167
    %v348 = vunpack.c.h.b16 %v167
    %v349 = vunpack.c.l.b16 %v168
    %v350 = vunpack.c.h.b16 %v168
    %v351 = vunpack.c.l.b16 %v169
    %v352 = vunpack.c.h.b16 %v169
    %v353 = vunpack.c.l.b16 %v170
    %v354 = vunpack.c.l.b16 %v171
    %v355 = vunpack.c.h.b16 %v171
    %v356 = vunpack.c.l.b16 %v172
    %v357 = vunpack.c.h.b16 %v172
    %v358 = vunpack.c.l.b16 %v173
    %v359 = vunpack.c.h.b16 %v173
    %v360 = vunpack.c.l.b16 %v174
    %v361 = vunpack.c.l.b16 %v175
    %v362 = vunpack.c.h.b16 %v175
    %v363 = vunpack.c.l.b16 %v176
    %v364 = vunpack.c.h.b16 %v176
    %v365 = vunpack.c.l.b16 %v177
    %v366 = vunpack.c.h.b16 %v177
    %v367 = vunpack.c.l.b16 %v178
    %v368 = vunpack.c.l.b16 %v179
    %v369 = vunpack.c.h.b16 %v179
    %v370 = vunpack.c.l.b16 %v180
    %v371 = vunpack.c.h.b16 %v180
    %v372 = vunpack.c.l.b16 %v181
    %v373 = vunpack.c.h.b16 %v181
    %v374 = vunpack.c.l.b16 %v182
    %v375 = vunpack.c.l.b16 %v183
    %v376 = vunpack.c.h.b16 %v183
    %v377 = vunpack.c.l.b16 %v184
    %v378 = vunpack.c.h.b16 %v184
    %v379 = vunpack.c.l.b16 %v185
    %v380 = vunpack.c.h.b16 %v185
    %v381 = vunpack.c.l.b16 %v186
    %v382 = vunpack.c.l.b16 %v187
    %v383 = vunpack.c.h.b16 %v187
    %v384 = vunpack.c.l.b16 %v188
    %v385 = vunpack.c.h.b16 %v188
    %v386 = vunpack.c.l.b16 %v189
    %v387 = vunpack.c.h.b16 %v189
    %v388 = vunpack.c.l.b16 %v190
    %v389 = vunpack.c.l.b16 %v191
    %v390 = vunpack.c.h.b16 %v191
    %v391 = vunpack.c.l.b16 %v192
    %v392 = vunpack.c.h.b16 %v192
    %v393 = vunpack.c.l.b16 %v193
    %v394 = vunpack.c.h.b16 %v193
    %v395 = vunpack.c.l.b16 %v194
    %v396 = vunpack.c.l.b16 %v195
    %v397 = vunpack.c.h.b16 %v195
    %v398 = vunpack.c.l.b16 %v196
    %v399 = vunpack.c.h.b16 %v196
    %v400 = vunpack.c.l.b16 %v197
    %v401 = vunpack.c.h.b16 %v197
    %v402 = vunpack.c.l.b16 %v198
    %v403 = vunpack.c.l.b16 %v199
    %v404 = vunpack.c.h.b16 %v199
    %v405 = vunpack.c.l.b16 %v200
    %v406 = vunpack.c.h.b16 %v200
    %v407 = vunpack.c.l.b16 %v201
    %v408 = vunpack.c.h.b16 %v201
    %v409 = vunpack.c.l.b16 %v202
    %v410 = vunpack.c.l.b16 %v203
    %v411 = vunpack.c.h.b16 %v203
    %v412 = vunpack.c.l.b16 %v204
    %v413 = vunpack.c.h.b16 %v204
    %v414 = vunpack.c.l.b16 %v205
    %v415 = vunpack.c.h.b16 %v205
    %v416 = vunpack.c.l.b16 %v206
    %v417 = vunpack.c.l.b16 %v207
    %v418 = vunpack.c.h.b16 %v207
    %v419 = vunpack.c.l.b16 %v208
    %v420 = vunpack.c.h.b16 %v208
    %v421 = vunpack.c.l.b16 %v209
    %v422 = vunpack.c.h.b16 %v209
    %v423 = vunpack.c.l.b16 %v210
    %v424 = vpack.c.b16 %v319, %v312
    %v425 = vpack.c.b16 %v320, %v313
    %v426 = vpack.c.b16 %v321, %v314
    %v427 = vpack.c.b16 %v322, %v315
    %v428 = vpack.c.b16 %v323, %v316
    %v429 = vpack.c.b16 %v324, %v317
    %v430 = vpack.c.b16 %v325, %v318
    %v431 = vpack.c.b16 %v333, %v326
    %v432 = vpack.c.b16 %v334, %v327
    %v433 = vpack.c.b16 %v335, %v328
    %v434 = vpack.c.b16 %v336, %v329
    %v435 = vpack.c.b16 %v337, %v330
    %v436 = vpack.c.b16 %v338, %v331
    %v437 = vpack.c.b16 %v339, %v332
    %v438 = vpack.c.b16 %v347, %v340
    %v439 = vpack.c.b16 %v348, %v341
    %v440 = vpack.c.b16 %v349, %v342
    %v441 = vpack.c.b16 %v350, %v343
    %v442 = vpack.c.b16 %v351, %v344
    %v443 = vpack.c.b16 %v352, %v345
    %v444 = vpack.c.b16 %v353, %v346
    %v445 = vpack.c.b16 %v361, %v354
    %v446 = vpack.c.b16 %v362, %v355
    %v447 = vpack.c.b16 %v363, %v356
    %v448 = vpack.c.b16 %v364, %v357
    %v449 = vpack.c.b16 %v365, %v358
    %v450 = vpack.c.b16 %v366, %v359
    %v451 = vpack.c.b16 %v367, %v360
    %v452 = vpack.c.b16 %v375, %v368
    %v453 = vpack.c.b16 %v376, %v369
    %v454 = vpack.c.b16 %v377, %v370
    %v455 = vpack.c.b16 %v378, %v371
    %v456 = vpack.c.b16 %v379, %v372
    %v457 = vpack.c.b16 %v380, %v373
    %v458 = vpack.c.b16 %v381, %v374
    %v459 = vpack.c.b16 %v389, %v382
    %v460 = vpack.c.b16 %v390, %v383
    %v461 = vpack.c.b16 %v391, %v384
    %v462 = vpack.c.b16 %v392, %v385
    %v463 = vpack.c.b16 %v393, %v386
    %v464 = vpack.c.b16 %v394, %v387
    %v465 = vpack.c.b16 %v395, %v388
    %v466 = vpack.c.b16 %v403, %v396
    %v467 = vpack.c.b16 %v404, %v397
    %v468 = vpack.c.b16 %v405, %v398
    %v469 = vpack.c.b16 %v406, %v399
    %v470 = vpack.c.b16 %v407, %v400
    %v471 = vpack.c.b16 %v408, %v401
    %v472 = vpack.c.b16 %v409, %v402
    %v473 = vpack.c.b16 %v417, %v410
    %v474 = vpack.c.b16 %v418, %v411
    %v475 = vpack.c.b16 %v419, %v412
    %v476 = vpack.c.b16 %v420, %v413
    %v477 = vpack.c.b16 %v421, %v414
    %v478 = vpack.c.b16 %v422, %v415
    %v479 = vpack.c.b16 %v423, %v416
    %536 = vmatprep.subr.bf16.mxu0 %v474
    %537 = vmatpush1.bf16.msra.mxu0 %v473
    %538 = vmatprep.subr.bf16.mxu0 %v467
    %539 = vmatpush1.bf16.msra.mxu0 %v466
    %540 = vmatprep.subr.bf16.mxu0 %v460
    %541 = vmatpush1.bf16.msra.mxu0 %v459
    %542 = vmatprep.subr.bf16.mxu0 %v453
    %543 = vmatpush1.bf16.msra.mxu0 %v452
    %544 = vmatprep.subr.bf16.mxu0 %v446
    %545 = vmatpush1.bf16.msra.mxu0 %v445
    %546 = vmatprep.subr.bf16.mxu0 %v439
    %547 = vmatpush1.bf16.msra.mxu0 %v438
    %548 = vmatprep.subr.bf16.mxu0 %v432
    %549 = vmatpush1.bf16.msra.mxu0 %v431
    %550 = vmatprep.subr.bf16.mxu0 %v425
    %551 = vmatpush1.bf16.msra.mxu0 %v424
    %552 = vmatprep.subr.bf16.mxu0 0
    %553 = vmatpush2.bf16.msra.mxu0 0
    %554 = vmatprep.subr.bf16.mxu0 0
    %555 = vmatpush2.bf16.msra.mxu0 0
    %556 = vmatprep.subr.bf16.mxu0 0
    %557 = vmatpush2.bf16.msra.mxu0 0
    %558 = vmatprep.subr.bf16.mxu0 0
    %559 = vmatpush2.bf16.msra.mxu0 0
    %560 = vmatprep.subr.bf16.mxu0 0
    %561 = vmatpush2.bf16.msra.mxu0 0
    %562 = vmatprep.subr.bf16.mxu0 0
    %563 = vmatpush2.bf16.msra.mxu0 0
    %564 = vmatprep.subr.bf16.mxu0 0
    %565 = vmatpush2.bf16.msra.mxu0 0
    %566 = vmatprep.subr.bf16.mxu0 0
    %567 = vmatpush2.bf16.msra.mxu0 0
    %568 = vmatprep.mubr.bf16.mxu0 0
    %569 = vmatmul.mubr.bf16.gmra.mxu0 %v146
    %v570 = vpop.f32.mrf.mxu0
    %v571 = vadd.f32 %v216, %v570
    %v572 = vpop.f32.mrf.mxu0
    %v573 = vadd.f32 %v220, %v572
    %v574 = vpop.f32.mrf.mxu0
    %v575 = vadd.f32 %v216, %v574
    %v576 = vpop.f32.mrf.mxu0
    %v577 = vadd.f32 %v220, %v576
    %578 = vdwg.mxu0
    %579 = vmatprep.subr.bf16.mxu0 %v476
    %580 = vmatpush1.bf16.msra.mxu0 %v475
    %581 = vmatprep.subr.bf16.mxu0 %v469
    %582 = vmatpush1.bf16.msra.mxu0 %v468
    %583 = vmatprep.subr.bf16.mxu0 %v462
    %584 = vmatpush1.bf16.msra.mxu0 %v461
    %585 = vmatprep.subr.bf16.mxu0 %v455
    %586 = vmatpush1.bf16.msra.mxu0 %v454
    %587 = vmatprep.subr.bf16.mxu0 %v448
    %588 = vmatpush1.bf16.msra.mxu0 %v447
    %589 = vmatprep.subr.bf16.mxu0 %v441
    %590 = vmatpush1.bf16.msra.mxu0 %v440
    %591 = vmatprep.subr.bf16.mxu0 %v434
    %592 = vmatpush1.bf16.msra.mxu0 %v433
    %593 = vmatprep.subr.bf16.mxu0 %v427
    %594 = vmatpush1.bf16.msra.mxu0 %v426
    %595 = vmatprep.subr.bf16.mxu0 0
    %596 = vmatpush2.bf16.msra.mxu0 0
    %597 = vmatprep.subr.bf16.mxu0 0
    %598 = vmatpush2.bf16.msra.mxu0 0
    %599 = vmatprep.subr.bf16.mxu0 0
    %600 = vmatpush2.bf16.msra.mxu0 0
    %601 = vmatprep.subr.bf16.mxu0 0
    %602 = vmatpush2.bf16.msra.mxu0 0
    %603 = vmatprep.subr.bf16.mxu0 0
    %604 = vmatpush2.bf16.msra.mxu0 0
    %605 = vmatprep.subr.bf16.mxu0 0
    %606 = vmatpush2.bf16.msra.mxu0 0
    %607 = vmatprep.subr.bf16.mxu0 0
    %608 = vmatpush2.bf16.msra.mxu0 0
    %609 = vmatprep.subr.bf16.mxu0 0
    %610 = vmatpush2.bf16.msra.mxu0 0
    %611 = vmatprep.mubr.bf16.mxu0 0
    %612 = vmatmul.mubr.bf16.gmra.mxu0 %v146
    %v613 = vpop.f32.mrf.mxu0
    %v614 = vadd.f32 %v224, %v613
    %v615 = vpop.f32.mrf.mxu0
    %v616 = vadd.f32 %v228, %v615
    %v617 = vpop.f32.mrf.mxu0
    %v618 = vadd.f32 %v224, %v617
    %v619 = vpop.f32.mrf.mxu0
    %v620 = vadd.f32 %v228, %v619
    %621 = vdwg.mxu0
    %622 = vmatprep.subr.bf16.mxu0 %v478
    %623 = vmatpush1.bf16.msra.mxu0 %v477
    %624 = vmatprep.subr.bf16.mxu0 %v471
    %625 = vmatpush1.bf16.msra.mxu0 %v470
    %626 = vmatprep.subr.bf16.mxu0 %v464
    %627 = vmatpush1.bf16.msra.mxu0 %v463
    %628 = vmatprep.subr.bf16.mxu0 %v457
    %629 = vmatpush1.bf16.msra.mxu0 %v456
    %630 = vmatprep.subr.bf16.mxu0 %v450
    %631 = vmatpush1.bf16.msra.mxu0 %v449
    %632 = vmatprep.subr.bf16.mxu0 %v443
    %633 = vmatpush1.bf16.msra.mxu0 %v442
    %634 = vmatprep.subr.bf16.mxu0 %v436
    %635 = vmatpush1.bf16.msra.mxu0 %v435
    %636 = vmatprep.subr.bf16.mxu0 %v429
    %637 = vmatpush1.bf16.msra.mxu0 %v428
    %638 = vmatprep.subr.bf16.mxu0 0
    %639 = vmatpush2.bf16.msra.mxu0 0
    %640 = vmatprep.subr.bf16.mxu0 0
    %641 = vmatpush2.bf16.msra.mxu0 0
    %642 = vmatprep.subr.bf16.mxu0 0
    %643 = vmatpush2.bf16.msra.mxu0 0
    %644 = vmatprep.subr.bf16.mxu0 0
    %645 = vmatpush2.bf16.msra.mxu0 0
    %646 = vmatprep.subr.bf16.mxu0 0
    %647 = vmatpush2.bf16.msra.mxu0 0
    %648 = vmatprep.subr.bf16.mxu0 0
    %649 = vmatpush2.bf16.msra.mxu0 0
    %650 = vmatprep.subr.bf16.mxu0 0
    %651 = vmatpush2.bf16.msra.mxu0 0
    %652 = vmatprep.subr.bf16.mxu0 0
    %653 = vmatpush2.bf16.msra.mxu0 0
    %654 = vmatprep.mubr.bf16.mxu0 0
    %655 = vmatmul.mubr.bf16.gmra.mxu0 %v146
    %v656 = vpop.f32.mrf.mxu0
    %v657 = vadd.f32 %v232, %v656
    %v658 = vpop.f32.mrf.mxu0
    %v659 = vadd.f32 %v236, %v658
    %v660 = vpop.f32.mrf.mxu0
    %v661 = vadd.f32 %v232, %v660
    %v662 = vpop.f32.mrf.mxu0
    %v663 = vadd.f32 %v236, %v662
    %664 = vdwg.mxu0
    %665 = vmatprep.subr.bf16.mxu0 0
    %666 = vmatpush1.bf16.msra.mxu0 %v479
    %667 = vmatprep.subr.bf16.mxu0 0
    %668 = vmatpush1.bf16.msra.mxu0 %v472
    %669 = vmatprep.subr.bf16.mxu0 0
    %670 = vmatpush1.bf16.msra.mxu0 %v465
    %671 = vmatprep.subr.bf16.mxu0 0
    %672 = vmatpush1.bf16.msra.mxu0 %v458
    %673 = vmatprep.subr.bf16.mxu0 0
    %674 = vmatpush1.bf16.msra.mxu0 %v451
    %675 = vmatprep.subr.bf16.mxu0 0
    %676 = vmatpush1.bf16.msra.mxu0 %v444
    %677 = vmatprep.subr.bf16.mxu0 0
    %678 = vmatpush1.bf16.msra.mxu0 %v437
    %679 = vmatprep.subr.bf16.mxu0 0
    %680 = vmatpush1.bf16.msra.mxu0 %v430
    %681 = vmatprep.subr.bf16.mxu0 0
    %682 = vmatpush2.bf16.msra.mxu0 0
    %683 = vmatprep.subr.bf16.mxu0 0
    %684 = vmatpush2.bf16.msra.mxu0 0
    %685 = vmatprep.subr.bf16.mxu0 0
    %686 = vmatpush2.bf16.msra.mxu0 0
    %687 = vmatprep.subr.bf16.mxu0 0
    %688 = vmatpush2.bf16.msra.mxu0 0
    %689 = vmatprep.subr.bf16.mxu0 0
    %690 = vmatpush2.bf16.msra.mxu0 0
    %691 = vmatprep.subr.bf16.mxu0 0
    %692 = vmatpush2.bf16.msra.mxu0 0
    %693 = vmatprep.subr.bf16.mxu0 0
    %694 = vmatpush2.bf16.msra.mxu0 0
    %695 = vmatprep.subr.bf16.mxu0 0
    %696 = vmatpush2.bf16.msra.mxu0 0
    %697 = vmatprep.mubr.bf16.mxu0 0
    %698 = vmatmul.mubr.bf16.gmra.mxu0 %v146
    %v699 = vpop.f32.mrf.mxu0
    %v700 = vadd.f32 %v240, %v699
    %v701 = vpop.f32.mrf.mxu0
    %v702 = vpop.f32.mrf.mxu0
    %v703 = vadd.f32 %v240, %v702
    %v704 = vpop.f32.mrf.mxu0
    %705 = vdwg.mxu0
    %v706 = vtanh.pop %v571
    %v707 = vtanh.pop %v573
    %v708 = vtanh.pop %v614
    %v709 = vtanh.pop %v616
    %v710 = vtanh.pop %v657
    %v711 = vtanh.pop %v659
    %v712 = vtanh.pop %v700
    %v713 = vtanh.pop %v575
    %v714 = vtanh.pop %v577
    %v715 = vtanh.pop %v618
    %v716 = vtanh.pop %v620
    %v717 = vtanh.pop %v661
    %v718 = vtanh.pop %v663
    %v719 = vtanh.pop %v703
    %v720 = vpack.c.bf16 %v713, %v706
    %v721 = vpack.c.bf16 %v714, %v707
    %v722 = vpack.c.bf16 %v715, %v708
    %v723 = vpack.c.bf16 %v716, %v709
    %v724 = vpack.c.bf16 %v717, %v710
    %v725 = vpack.c.bf16 %v718, %v711
    %v726 = vpack.c.bf16 %v719, %v712
    %v734 = vunpack.c.l.b16 %v720
    %v735 = vunpack.c.l.b16 %v721
    %v736 = vunpack.c.l.b16 %v722
    %v737 = vunpack.c.l.b16 %v723
    %v738 = vunpack.c.l.b16 %v724
    %v739 = vunpack.c.l.b16 %v725
    %v740 = vunpack.c.l.b16 %v726
    %v741 = vunpack.c.h.b16 %v720
    %v742 = vunpack.c.h.b16 %v721
    %v743 = vunpack.c.h.b16 %v722
    %v744 = vunpack.c.h.b16 %v723
    %v745 = vunpack.c.h.b16 %v724
    %v746 = vunpack.c.h.b16 %v725
    %v747 = vunpack.c.h.b16 %v726
    %v748 = vpack.c.b16 %v735, %v734
    %v749 = vpack.c.b16 %v737, %v736
    %v750 = vpack.c.b16 %v739, %v738
    %v751 = vpack.c.b16 %v740, %v740
    %v752 = vpack.c.b16 %v742, %v741
    %v753 = vpack.c.b16 %v744, %v743
    %v754 = vpack.c.b16 %v746, %v745
    %v755 = vpack.c.b16 %v747, %v747
    %764 = vst [vmem:[#allocation2] sm:$0xff] %v748
    %765 = vst [vmem:[#allocation2 + $0x8] sm:$0xff] %v749
    %766 = vst [vmem:[#allocation2 + $0x10] sm:$0xff] %v750
    %vm767 = vcmask 125952
    %768 = vst.msk [vmem:[#allocation2 + $0x18] sm:$0xf] %vm767, %v751
    %769 = vst [vmem:[#allocation2 + $0x1c] sm:$0xff] %v752
    %770 = vst [vmem:[#allocation2 + $0x24] sm:$0xff] %v753
    %771 = vst [vmem:[#allocation2 + $0x2c] sm:$0xff] %v754
    %772 = vst.msk [vmem:[#allocation2 + $0x34] sm:$0xf] %vm767, %v755
    // Predicated region
    $region22: #{tpu_custom_call.1} parent=1 // pred_check
      _
    $region23: #{tpu_custom_call.1} parent=1 // pred_check_branch
      %774 = sbr.rel (0) target = $region25
    $region24: #{tpu_custom_call.1} parent=1 // pred_region
      %s776 = ssub.s32 896, 896
      %777 = vsyncadd [#allocation3], %s776
      %s778 = sshll.u32 [#allocation2], 4
      %s779 = int_to_ptr.vmem [resolvable:$true] %s778
      %784 = dma.vmem_to_hbm [thread:$0]  %s779, 896, %s5, [#allocation3], 448, 448, 28
    $region25: #{tpu_custom_call.1} parent=1 // pred_fallthru
      _
    // Predicated region
    $region26: #{tpu_custom_call.1} parent=1 // pred_check
      _
    $region27: #{tpu_custom_call.1} parent=1 // pred_check_branch
      %786 = sbr.rel (0) target = $region29
    $region28: #{tpu_custom_call.1} parent=1 // pred_region
      %787 = dma.done [#allocation3], 896
    $region29: #{tpu_custom_call.1} parent=1 // pred_fallthru
      _
    %788 = vsyncpa [#allocation3], 1

</llo_original>
